<compile_context>
chip_gen: v7x
topology: tpu7x:2x2x1
jax: 0.10.0
libtpu: 0.0.40
codegen_flags: <defaults>
</compile_context>

<pallas_src>
import math
import functools

import jax
import jax.numpy as jnp
from jax.experimental import pallas as pl
from jax.experimental.pallas import tpu as pltpu


def _round_up(n, m):
    return ((n + m - 1) // m) * m


def _attentive_kernel(x_ref,
                      w1_ref, b1_ref, w2_ref, b2_ref, w3_ref, b3_ref, w4_ref, b4_ref,
                      wqv_ref, bqv_ref, kt_ref, mem_ref,
                      out_ref,
                      *, out_dim):
    def mxu(a, b_ref):
        b = b_ref[...]
        # cast the activation to the weight dtype (bf16 on the default path),
        # always accumulate in f32 on the MXU.
        return jnp.dot(a.astype(b.dtype), b, preferred_element_type=jnp.float32)

    x = x_ref[...]                                                   # (TN, D_in)

    # ---- MLP: 4 x (Linear + ReLU), f32 accumulation / biases -----------------------
    h = jnp.maximum(mxu(x, w1_ref) + b1_ref[...], 0.0)
    h = jnp.maximum(mxu(h, w2_ref) + b2_ref[...], 0.0)
    h = jnp.maximum(mxu(h, w3_ref) + b3_ref[...], 0.0)
    h = jnp.maximum(mxu(h, w4_ref) + b4_ref[...], 0.0)               # (TN, H)

    # ---- fused [value-head-through-wo | query] projection: one MXU pass ------------
    # lanes [:out_dim]  = h @ (wv@wo) + (bv@wo + bo)
    # lanes [out_dim:]  = h @ wq + bq
    proj = mxu(h, wqv_ref) + bqv_ref[...]                            # (TN, out_dim+Kd)

    # ---- attention logits ------------------------------------------------------------
    # kt is (out_dim+Kd, Ms): the first out_dim rows are zeros, the rest is
    # (1/sqrt(d)) * k^T, so proj can be used as the MXU LHS without any slicing.
    z = mxu(proj, kt_ref)                                            # (TN, Ms)
    e = jnp.exp(z - jnp.max(z, axis=-1, keepdims=True))              # unnormalized softmax

    # ---- deferred normalization through the fused memory/output matmul --------------
    # mem_ref is [memory @ wo | ones]: one matmul yields [s_unnorm | denom].
    sa = mxu(e, mem_ref)                                             # (TN, out_dim+1)
    s_un = sa[:, :out_dim]
    denom = sa[:, out_dim:out_dim + 1]

    out_ref[...] = (proj[:, :out_dim]
                    + s_un * pl.reciprocal(denom, approx=True)
                    ).astype(out_ref.dtype)


def attentive_forward(x, params, *, key_dim=16, tile_n=1024, min_tiles=2,
                      compute_dtype=jnp.bfloat16):
    """x: (N, input_dim) float32. params: dict of weights (see init_params)."""
    N, d_in = x.shape
    out_dim = params["wo"].shape[1]
    f32 = jnp.float32

    # ---- algebraic folding of the output head (one-time, f32) -----------------------
    wo, bo = params["wo"], params["bo"]
    wv_fold = params["wv"] @ wo                                   # (H, out_dim)
    bias_fold = params["bv"] @ wo + bo                            # (1, out_dim)
    memory = params["memory"]
    mem_aug = jnp.concatenate(
        [memory @ wo, jnp.ones((memory.shape[0], 1), f32)], axis=1)   # (Ms, out_dim+1)

    # keys: projected, scaled by 1/sqrt(d), transposed, zero-row-padded to align with
    # the fused [value | query] projection lanes.
    k = (memory @ params["wk"] + params["bk"]) * (1.0 / math.sqrt(key_dim))
    kt_aug = jnp.concatenate(
        [jnp.zeros((out_dim, memory.shape[0]), f32), k.T], axis=0)    # (out_dim+Kd, Ms)

    # fused projection weight / bias: [wv@wo | wq], [bv@wo + bo | bq]
    wqv = jnp.concatenate([wv_fold, params["wq"]], axis=1)            # (H, out_dim+Kd)
    bqv = jnp.concatenate([bias_fold, params["bq"]], axis=1)          # (1, out_dim+Kd)

    # ---- batch tiling: balanced tiles, >=2 grid steps (v7x megacore), mult-of-16 ----
    min_tiles = max(1, int(min_tiles))
    tile_n = max(16, int(tile_n))
    num_tiles = max(min_tiles, pl.cdiv(N, tile_n))
    tile = _round_up(pl.cdiv(N, num_tiles), 16)     # 16-sublane aligned (bf16 packing)
    n_pad = tile * num_tiles
    x_p = jnp.pad(x, ((0, n_pad - N), (0, 0))) if n_pad != N else x
    x_p = x_p.astype(compute_dtype)

    def cd(a):
        return a.astype(compute_dtype)

    weight_args = [
        cd(params["w1"]), params["b1"].astype(f32),
        cd(params["w2"]), params["b2"].astype(f32),
        cd(params["w3"]), params["b3"].astype(f32),
        cd(params["w4"]), params["b4"].astype(f32),
        cd(wqv), bqv.astype(f32),
        cd(kt_aug), cd(mem_aug),
    ]

    def const_spec(a):
        return pl.BlockSpec(a.shape, lambda i: (0, 0))    # full block, grid-invariant

    in_specs = [pl.BlockSpec((tile, d_in), lambda i: (i, 0))]
    in_specs += [const_spec(a) for a in weight_args]

    # ---- VMEM budget: weights (2x), double-buffered x/out tiles, in-kernel temps ----
    mem_size = memory.shape[0]
    hidden = params["w4"].shape[1]
    cbytes = jnp.dtype(compute_dtype).itemsize
    weight_bytes = sum(int(a.size) * a.dtype.itemsize for a in weight_args)
    io_bytes = 2 * tile * (d_in * cbytes + out_dim * 4)               # double-buffered
    interm_bytes = tile * (2 * mem_size + 2 * hidden
                           + 2 * (out_dim + key_dim) + 2 * (out_dim + 1)) * 4
    vmem_limit = int(min(32 << 20,
                         max(16 << 20,
                             2 * weight_bytes + io_bytes + interm_bytes + (4 << 20))))

    kernel = functools.partial(_attentive_kernel, out_dim=out_dim)

    out = pl.pallas_call(
        kernel,
        out_shape=jax.ShapeDtypeStruct((n_pad, out_dim), f32),
        grid_spec=pltpu.PrefetchScalarGridSpec(
            num_scalar_prefetch=0,
            grid=(num_tiles,),
            in_specs=in_specs,
            out_specs=pl.BlockSpec((tile, out_dim), lambda i: (i, 0)),
        ),
        compiler_params=pltpu.CompilerParams(
            dimension_semantics=("parallel",),
            vmem_limit_bytes=vmem_limit),
    )(x_p, *weight_args)

    return out[:N]


def init_params(key, input_dim, hidden_dims=(64, 64, 64, 64),
                memory_size=256, memory_dim=32, key_dim=16, output_dim=2):
    """Deterministic synthetic init (shapes match the PyTorch module)."""
    keys = jax.random.split(key, 20)
    ki = iter(keys)

    def linear(k, d_in, d_out):
        scale = 1.0 / math.sqrt(d_in)
        w = jax.random.uniform(k, (d_in, d_out), jnp.float32, -scale, scale)
        b = jax.random.uniform(jax.random.fold_in(k, 1), (1, d_out), jnp.float32,
                               -scale, scale)
        return w, b

    params = {}
    dims = [input_dim] + list(hidden_dims)
    for idx, (d1, d2) in enumerate(zip(dims[:-1], dims[1:]), start=1):
        w, b = linear(next(ki), d1, d2)
        params[f"w{idx}"] = w
        params[f"b{idx}"] = b
    params["wv"], params["bv"] = linear(next(ki), hidden_dims[-1], memory_dim)
    params["wq"], params["bq"] = linear(next(ki), hidden_dims[-1], key_dim)
    params["wk"], params["bk"] = linear(next(ki), memory_dim, key_dim)
    params["wo"], params["bo"] = linear(next(ki), memory_dim, output_dim)
    params["memory"] = jax.random.normal(next(ki), (memory_size, memory_dim),
                                         jnp.float32)
    return params


def attentive_reference(x, params, *, key_dim=16):
    """Pure-JAX reference mirroring the PyTorch forward (2-D input case)."""
    h = x
    for idx in range(1, 5):
        h = jnp.maximum(h @ params[f"w{idx}"] + params[f"b{idx}"], 0.0)
    v = h @ params["wv"] + params["bv"]
    q = h @ params["wq"] + params["bq"]
    k = params["memory"] @ params["wk"] + params["bk"]
    z = (q @ k.T) / math.sqrt(key_dim)
    p = jax.nn.softmax(z, axis=-1)
    s = p @ params["memory"]
    return (v + s) @ params["wo"] + params["bo"]


if __name__ == "__main__":
    key = jax.random.PRNGKey(0)
    input_dim = 32

    pkey, xkey, xkey2 = jax.random.split(key, 3)
    params = init_params(pkey, input_dim)

    # Default bf16-MXU path; small batch -> forced 2-step grid (v7x megacore split).
    x = jax.random.normal(xkey, (16, input_dim), jnp.float32)
    out = jax.block_until_ready(attentive_forward(x, params, key_dim=16))
    ref = attentive_reference(x, params, key_dim=16)
    assert out.shape == (16, 2)
    # bf16 MXU operands + approx (EUP) reciprocal -> relaxed tolerance.
    assert jnp.allclose(out, ref, atol=1e-1, rtol=1e-1), (
        f"bf16 max abs err: {jnp.max(jnp.abs(out - ref))}")

    # f32 path exercising a 3-step grid with batch tail padding (N=40, tile 16 -> 48).
    x2 = jax.random.normal(xkey2, (40, input_dim), jnp.float32)
    out2 = jax.block_until_ready(
        attentive_forward(x2, params, key_dim=16, tile_n=16,
                          compute_dtype=jnp.float32))
    ref2 = attentive_reference(x2, params, key_dim=16)
    assert out2.shape == (40, 2)
    assert jnp.allclose(out2, ref2, atol=1e-2, rtol=1e-2), (
        f"f32 max abs err: {jnp.max(jnp.abs(out2 - ref2))}")

    print("KERNEL_OK")
</pallas_src>

<mosaic_0001>
module attributes {stable_mosaic.version = 11 : i64} {
  func.func @_attentive_kernel(%arg0: i32, %arg1: memref<16x32xbf16, #tpu.memory_space<vmem>>, %arg2: memref<32x64xbf16, #tpu.memory_space<vmem>>, %arg3: memref<1x64xf32, #tpu.memory_space<vmem>>, %arg4: memref<64x64xbf16, #tpu.memory_space<vmem>>, %arg5: memref<1x64xf32, #tpu.memory_space<vmem>>, %arg6: memref<64x64xbf16, #tpu.memory_space<vmem>>, %arg7: memref<1x64xf32, #tpu.memory_space<vmem>>, %arg8: memref<64x64xbf16, #tpu.memory_space<vmem>>, %arg9: memref<1x64xf32, #tpu.memory_space<vmem>>, %arg10: memref<64x18xbf16, #tpu.memory_space<vmem>>, %arg11: memref<1x18xf32, #tpu.memory_space<vmem>>, %arg12: memref<18x256xbf16, #tpu.memory_space<vmem>>, %arg13: memref<256x3xbf16, #tpu.memory_space<vmem>>, %arg14: memref<16x2xf32, #tpu.memory_space<vmem>>) attributes {dimension_semantics = [#tpu.dimension_semantics<parallel>], iteration_bounds = array<i64: 2>, scalar_prefetch = 0 : i64, scratch_operands = 0 : i64, tpu.core_type = #tpu.core_type<tc>, window_params = [{transform_indices = @transform_0, window_bounds = array<i64: 16, 32>}, {pipeline_mode = #tpu.pipeline_mode<synchronous>, transform_indices = @transform_1, window_bounds = array<i64: 32, 64>}, {pipeline_mode = #tpu.pipeline_mode<synchronous>, transform_indices = @transform_2, window_bounds = array<i64: 1, 64>}, {pipeline_mode = #tpu.pipeline_mode<synchronous>, transform_indices = @transform_3, window_bounds = array<i64: 64, 64>}, {pipeline_mode = #tpu.pipeline_mode<synchronous>, transform_indices = @transform_4, window_bounds = array<i64: 1, 64>}, {pipeline_mode = #tpu.pipeline_mode<synchronous>, transform_indices = @transform_5, window_bounds = array<i64: 64, 64>}, {pipeline_mode = #tpu.pipeline_mode<synchronous>, transform_indices = @transform_6, window_bounds = array<i64: 1, 64>}, {pipeline_mode = #tpu.pipeline_mode<synchronous>, transform_indices = @transform_7, window_bounds = array<i64: 64, 64>}, {pipeline_mode = #tpu.pipeline_mode<synchronous>, transform_indices = @transform_8, window_bounds = array<i64: 1, 64>}, {pipeline_mode = #tpu.pipeline_mode<synchronous>, transform_indices = @transform_9, window_bounds = array<i64: 64, 18>}, {pipeline_mode = #tpu.pipeline_mode<synchronous>, transform_indices = @transform_10, window_bounds = array<i64: 1, 18>}, {pipeline_mode = #tpu.pipeline_mode<synchronous>, transform_indices = @transform_11, window_bounds = array<i64: 18, 256>}, {pipeline_mode = #tpu.pipeline_mode<synchronous>, transform_indices = @transform_12, window_bounds = array<i64: 256, 3>}, {transform_indices = @transform_13, window_bounds = array<i64: 16, 2>}]} {
    %c0 = arith.constant 0 : index
    %c0_0 = arith.constant 0 : index
    %0 = vector.load %arg1[%c0, %c0_0] : memref<16x32xbf16, #tpu.memory_space<vmem>>, vector<16x32xbf16>
    %c0_1 = arith.constant 0 : index
    %c0_2 = arith.constant 0 : index
    %1 = vector.load %arg2[%c0_1, %c0_2] : memref<32x64xbf16, #tpu.memory_space<vmem>>, vector<32x64xbf16>
    %cst = arith.constant dense<0.000000e+00> : vector<16x64xf32>
    %2 = tpu.matmul %0, %1, %cst {dimension_numbers = #tpu.dot_dimension_numbers<[1], [0], [0], [1], [0, 0, 1, 1], [], []>} : vector<16x32xbf16>, vector<32x64xbf16>, vector<16x64xf32> -> vector<16x64xf32>
    %c0_3 = arith.constant 0 : index
    %c0_4 = arith.constant 0 : index
    %3 = vector.load %arg3[%c0_3, %c0_4] : memref<1x64xf32, #tpu.memory_space<vmem>>, vector<1x64xf32>
    %4 = vector.broadcast %3 : vector<1x64xf32> to vector<16x64xf32>
    %5 = arith.addf %2, %4 : vector<16x64xf32>
    %cst_5 = arith.constant 0.000000e+00 : f32
    %6 = vector.broadcast %cst_5 : f32 to vector<16x64xf32>
    %7 = arith.maximumf %5, %6 : vector<16x64xf32>
    %c0_6 = arith.constant 0 : index
    %c0_7 = arith.constant 0 : index
    %8 = vector.load %arg4[%c0_6, %c0_7] : memref<64x64xbf16, #tpu.memory_space<vmem>>, vector<64x64xbf16>
    %9 = arith.truncf %7 : vector<16x64xf32> to vector<16x64xbf16>
    %cst_8 = arith.constant dense<0.000000e+00> : vector<16x64xf32>
    %10 = tpu.matmul %9, %8, %cst_8 {dimension_numbers = #tpu.dot_dimension_numbers<[1], [0], [0], [1], [0, 0, 1, 1], [], []>} : vector<16x64xbf16>, vector<64x64xbf16>, vector<16x64xf32> -> vector<16x64xf32>
    %c0_9 = arith.constant 0 : index
    %c0_10 = arith.constant 0 : index
    %11 = vector.load %arg5[%c0_9, %c0_10] : memref<1x64xf32, #tpu.memory_space<vmem>>, vector<1x64xf32>
    %12 = vector.broadcast %11 : vector<1x64xf32> to vector<16x64xf32>
    %13 = arith.addf %10, %12 : vector<16x64xf32>
    %cst_11 = arith.constant 0.000000e+00 : f32
    %14 = vector.broadcast %cst_11 : f32 to vector<16x64xf32>
    %15 = arith.maximumf %13, %14 : vector<16x64xf32>
    %c0_12 = arith.constant 0 : index
    %c0_13 = arith.constant 0 : index
    %16 = vector.load %arg6[%c0_12, %c0_13] : memref<64x64xbf16, #tpu.memory_space<vmem>>, vector<64x64xbf16>
    %17 = arith.truncf %15 : vector<16x64xf32> to vector<16x64xbf16>
    %cst_14 = arith.constant dense<0.000000e+00> : vector<16x64xf32>
    %18 = tpu.matmul %17, %16, %cst_14 {dimension_numbers = #tpu.dot_dimension_numbers<[1], [0], [0], [1], [0, 0, 1, 1], [], []>} : vector<16x64xbf16>, vector<64x64xbf16>, vector<16x64xf32> -> vector<16x64xf32>
    %c0_15 = arith.constant 0 : index
    %c0_16 = arith.constant 0 : index
    %19 = vector.load %arg7[%c0_15, %c0_16] : memref<1x64xf32, #tpu.memory_space<vmem>>, vector<1x64xf32>
    %20 = vector.broadcast %19 : vector<1x64xf32> to vector<16x64xf32>
    %21 = arith.addf %18, %20 : vector<16x64xf32>
    %cst_17 = arith.constant 0.000000e+00 : f32
    %22 = vector.broadcast %cst_17 : f32 to vector<16x64xf32>
    %23 = arith.maximumf %21, %22 : vector<16x64xf32>
    %c0_18 = arith.constant 0 : index
    %c0_19 = arith.constant 0 : index
    %24 = vector.load %arg8[%c0_18, %c0_19] : memref<64x64xbf16, #tpu.memory_space<vmem>>, vector<64x64xbf16>
    %25 = arith.truncf %23 : vector<16x64xf32> to vector<16x64xbf16>
    %cst_20 = arith.constant dense<0.000000e+00> : vector<16x64xf32>
    %26 = tpu.matmul %25, %24, %cst_20 {dimension_numbers = #tpu.dot_dimension_numbers<[1], [0], [0], [1], [0, 0, 1, 1], [], []>} : vector<16x64xbf16>, vector<64x64xbf16>, vector<16x64xf32> -> vector<16x64xf32>
    %c0_21 = arith.constant 0 : index
    %c0_22 = arith.constant 0 : index
    %27 = vector.load %arg9[%c0_21, %c0_22] : memref<1x64xf32, #tpu.memory_space<vmem>>, vector<1x64xf32>
    %28 = vector.broadcast %27 : vector<1x64xf32> to vector<16x64xf32>
    %29 = arith.addf %26, %28 : vector<16x64xf32>
    %cst_23 = arith.constant 0.000000e+00 : f32
    %30 = vector.broadcast %cst_23 : f32 to vector<16x64xf32>
    %31 = arith.maximumf %29, %30 : vector<16x64xf32>
    %c0_24 = arith.constant 0 : index
    %c0_25 = arith.constant 0 : index
    %32 = vector.load %arg10[%c0_24, %c0_25] : memref<64x18xbf16, #tpu.memory_space<vmem>>, vector<64x18xbf16>
    %33 = arith.truncf %31 : vector<16x64xf32> to vector<16x64xbf16>
    %cst_26 = arith.constant dense<0.000000e+00> : vector<16x18xf32>
    %34 = tpu.matmul %33, %32, %cst_26 {dimension_numbers = #tpu.dot_dimension_numbers<[1], [0], [0], [1], [0, 0, 1, 1], [], []>} : vector<16x64xbf16>, vector<64x18xbf16>, vector<16x18xf32> -> vector<16x18xf32>
    %c0_27 = arith.constant 0 : index
    %c0_28 = arith.constant 0 : index
    %35 = vector.load %arg11[%c0_27, %c0_28] : memref<1x18xf32, #tpu.memory_space<vmem>>, vector<1x18xf32>
    %36 = vector.broadcast %35 : vector<1x18xf32> to vector<16x18xf32>
    %37 = arith.addf %34, %36 : vector<16x18xf32>
    %c0_29 = arith.constant 0 : index
    %c0_30 = arith.constant 0 : index
    %38 = vector.load %arg12[%c0_29, %c0_30] : memref<18x256xbf16, #tpu.memory_space<vmem>>, vector<18x256xbf16>
    %39 = arith.truncf %37 : vector<16x18xf32> to vector<16x18xbf16>
    %cst_31 = arith.constant dense<0.000000e+00> : vector<16x256xf32>
    %40 = tpu.matmul %39, %38, %cst_31 {dimension_numbers = #tpu.dot_dimension_numbers<[1], [0], [0], [1], [0, 0, 1, 1], [], []>} : vector<16x18xbf16>, vector<18x256xbf16>, vector<16x256xf32> -> vector<16x256xf32>
    %cst_32 = arith.constant dense<0xFF800000> : vector<16xf32>
    %41 = vector.multi_reduction <maximumf>, %40, %cst_32 [1] : vector<16x256xf32> to vector<16xf32>
    %42 = vector.shape_cast %41 : vector<16xf32> to vector<16x1xf32>
    %43 = vector.broadcast %42 : vector<16x1xf32> to vector<16x256xf32>
    %44 = arith.subf %40, %43 : vector<16x256xf32>
    %45 = math.exp %44 : vector<16x256xf32>
    %c0_33 = arith.constant 0 : index
    %c0_34 = arith.constant 0 : index
    %46 = vector.load %arg13[%c0_33, %c0_34] : memref<256x3xbf16, #tpu.memory_space<vmem>>, vector<256x3xbf16>
    %47 = arith.truncf %45 : vector<16x256xf32> to vector<16x256xbf16>
    %cst_35 = arith.constant dense<0.000000e+00> : vector<16x3xf32>
    %48 = tpu.matmul %47, %46, %cst_35 {dimension_numbers = #tpu.dot_dimension_numbers<[1], [0], [0], [1], [0, 0, 1, 1], [], []>} : vector<16x256xbf16>, vector<256x3xbf16>, vector<16x3xf32> -> vector<16x3xf32>
    %49 = vector.extract_strided_slice %48 {offsets = [0, 0], sizes = [16, 2], strides = [1, 1]} : vector<16x3xf32> to vector<16x2xf32>
    %50 = vector.extract_strided_slice %48 {offsets = [0, 2], sizes = [16, 1], strides = [1, 1]} : vector<16x3xf32> to vector<16x1xf32>
    %51 = vector.extract_strided_slice %37 {offsets = [0, 0], sizes = [16, 2], strides = [1, 1]} : vector<16x18xf32> to vector<16x2xf32>
    %52 = tpu.reciprocal %50 {approx = true} : vector<16x1xf32> -> vector<16x1xf32>
    %53 = vector.broadcast %52 : vector<16x1xf32> to vector<16x2xf32>
    %54 = arith.mulf %49, %53 : vector<16x2xf32>
    %55 = arith.addf %51, %54 : vector<16x2xf32>
    %c0_36 = arith.constant 0 : index
    %c0_37 = arith.constant 0 : index
    %56 = vector.load %arg14[%c0_36, %c0_37] : memref<16x2xf32, #tpu.memory_space<vmem>>, vector<16x2xf32>
    tpu.vector_store %arg14[%c0_36, %c0_37], %55 {strides = array<i32>} : memref<16x2xf32, #tpu.memory_space<vmem>>, vector<16x2xf32>,
    return
  }
  func.func @transform_0(%arg0: i32) -> (i32, i32) {
    %c0_i32 = arith.constant 0 : i32
    %c0_i32_0 = arith.constant 0 : i32
    return %arg0, %c0_i32 : i32, i32
  }
  func.func @transform_1(%arg0: i32) -> (i32, i32) {
    %c0_i32 = arith.constant 0 : i32
    %c0_i32_0 = arith.constant 0 : i32
    %c0_i32_1 = arith.constant 0 : i32
    return %c0_i32, %c0_i32_0 : i32, i32
  }
  func.func @transform_2(%arg0: i32) -> (i32, i32) {
    %c0_i32 = arith.constant 0 : i32
    %c0_i32_0 = arith.constant 0 : i32
    %c0_i32_1 = arith.constant 0 : i32
    return %c0_i32, %c0_i32_0 : i32, i32
  }
  func.func @transform_3(%arg0: i32) -> (i32, i32) {
    %c0_i32 = arith.constant 0 : i32
    %c0_i32_0 = arith.constant 0 : i32
    %c0_i32_1 = arith.constant 0 : i32
    return %c0_i32, %c0_i32_0 : i32, i32
  }
  func.func @transform_4(%arg0: i32) -> (i32, i32) {
    %c0_i32 = arith.constant 0 : i32
    %c0_i32_0 = arith.constant 0 : i32
    %c0_i32_1 = arith.constant 0 : i32
    return %c0_i32, %c0_i32_0 : i32, i32
  }
  func.func @transform_5(%arg0: i32) -> (i32, i32) {
    %c0_i32 = arith.constant 0 : i32
    %c0_i32_0 = arith.constant 0 : i32
    %c0_i32_1 = arith.constant 0 : i32
    return %c0_i32, %c0_i32_0 : i32, i32
  }
  func.func @transform_6(%arg0: i32) -> (i32, i32) {
    %c0_i32 = arith.constant 0 : i32
    %c0_i32_0 = arith.constant 0 : i32
    %c0_i32_1 = arith.constant 0 : i32
    return %c0_i32, %c0_i32_0 : i32, i32
  }
  func.func @transform_7(%arg0: i32) -> (i32, i32) {
    %c0_i32 = arith.constant 0 : i32
    %c0_i32_0 = arith.constant 0 : i32
    %c0_i32_1 = arith.constant 0 : i32
    return %c0_i32, %c0_i32_0 : i32, i32
  }
  func.func @transform_8(%arg0: i32) -> (i32, i32) {
    %c0_i32 = arith.constant 0 : i32
    %c0_i32_0 = arith.constant 0 : i32
    %c0_i32_1 = arith.constant 0 : i32
    return %c0_i32, %c0_i32_0 : i32, i32
  }
  func.func @transform_9(%arg0: i32) -> (i32, i32) {
    %c0_i32 = arith.constant 0 : i32
    %c0_i32_0 = arith.constant 0 : i32
    %c0_i32_1 = arith.constant 0 : i32
    return %c0_i32, %c0_i32_0 : i32, i32
  }
  func.func @transform_10(%arg0: i32) -> (i32, i32) {
    %c0_i32 = arith.constant 0 : i32
    %c0_i32_0 = arith.constant 0 : i32
    %c0_i32_1 = arith.constant 0 : i32
    return %c0_i32, %c0_i32_0 : i32, i32
  }
  func.func @transform_11(%arg0: i32) -> (i32, i32) {
    %c0_i32 = arith.constant 0 : i32
    %c0_i32_0 = arith.constant 0 : i32
    %c0_i32_1 = arith.constant 0 : i32
    return %c0_i32, %c0_i32_0 : i32, i32
  }
  func.func @transform_12(%arg0: i32) -> (i32, i32) {
    %c0_i32 = arith.constant 0 : i32
    %c0_i32_0 = arith.constant 0 : i32
    %c0_i32_1 = arith.constant 0 : i32
    return %c0_i32, %c0_i32_0 : i32, i32
  }
  func.func @transform_13(%arg0: i32) -> (i32, i32) {
    %c0_i32 = arith.constant 0 : i32
    %c0_i32_0 = arith.constant 0 : i32
    return %arg0, %c0_i32 : i32, i32
  }
}

</mosaic_0001>

<llo_original>
// kernel: tpu_custom_call.1
$region0: #{tpu_custom_call.1}
  #allocation0 [shape = 'u32[]', space=smem, size = 0x4, offset = 0x4, fixed_abs, tag = 'smem constant byte address 0x4 - core index']
  #allocation1 [shape = 'u32[144,128]{1,0:T(1,128)}', space=vmem, size = 0x12000, scoped, tag = 'internal scratch']
  %s0 = inlined_call_operand.vmem [shape: bf16[32,32], index: 0, kind: input, shape index: {}]
  %s1 = inlined_call_operand.vmem [shape: bf16[32,64], index: 1, kind: input, shape index: {}]
  %s2 = inlined_call_operand.vmem [shape: f32[1,64], index: 2, kind: input, shape index: {}]
  %s3 = inlined_call_operand.vmem [shape: bf16[64,64], index: 3, kind: input, shape index: {}]
  %s4 = inlined_call_operand.vmem [shape: f32[1,64], index: 4, kind: input, shape index: {}]
  %s5 = inlined_call_operand.vmem [shape: bf16[64,64], index: 5, kind: input, shape index: {}]
  %s6 = inlined_call_operand.vmem [shape: f32[1,64], index: 6, kind: input, shape index: {}]
  %s7 = inlined_call_operand.vmem [shape: bf16[64,64], index: 7, kind: input, shape index: {}]
  %s8 = inlined_call_operand.vmem [shape: f32[1,64], index: 8, kind: input, shape index: {}]
  %s9 = inlined_call_operand.vmem [shape: bf16[64,18], index: 9, kind: input, shape index: {}]
  %s10 = inlined_call_operand.vmem [shape: f32[1,18], index: 10, kind: input, shape index: {}]
  %s11 = inlined_call_operand.vmem [shape: bf16[18,256], index: 11, kind: input, shape index: {}]
  %s12 = inlined_call_operand.vmem [shape: bf16[256,3], index: 12, kind: input, shape index: {}]
  %s13 = inlined_call_operand.vmem [shape: f32[32,2], index: 13, kind: output, shape index: {}]
  %s14 = sld [smem:[#allocation0]]
  $region85: #{tpu_custom_call.1} parent=0
    _
  %s16 = ssub.s32 1, %s14
  %s17 = scalar_select 0, %s16, %s14
  loop: start=0, step=1, limit=4
  $region2: #{tpu_custom_call.1} parent=0 // loop_pre_header
    _
  $region3: #{tpu_custom_call.1} parent=0 // loop_header
    %s19 = sphi 0, %s23
    %p20 = scmp.ge.s32.totalorder %s19, 4
    %s29 = sphi 0, %s31
    %s32 = sphi 0, %s29
    %s33 = sphi 0, %s32
    %s49 = sphi 0, %s33
    %s53 = sphi 0, %s53
    %s55 = sphi 0, %s53
    %s56 = sphi 0, %s55
    %s70 = sphi 0, %s56
    %s74 = sphi 0, %s74
    %s76 = sphi 0, %s74
    %s77 = sphi 0, %s76
    %s91 = sphi 0, %s77
    %s95 = sphi 0, %s95
    %s97 = sphi 0, %s95
    %s98 = sphi 0, %s97
    %s112 = sphi 0, %s98
    %s116 = sphi 0, %s116
    %s118 = sphi 0, %s116
    %s119 = sphi 0, %s118
    %s133 = sphi 0, %s119
    %s137 = sphi 0, %s137
    %s139 = sphi 0, %s137
    %s140 = sphi 0, %s139
    %s154 = sphi 0, %s140
    %s158 = sphi 0, %s158
    %s160 = sphi 0, %s158
    %s161 = sphi 0, %s160
    %s175 = sphi 0, %s161
    %s179 = sphi 0, %s179
    %s181 = sphi 0, %s179
    %s182 = sphi 0, %s181
    %s196 = sphi 0, %s182
    %s200 = sphi 0, %s200
    %s202 = sphi 0, %s200
    %s203 = sphi 0, %s202
    %s217 = sphi 0, %s203
    %s221 = sphi 0, %s221
    %s223 = sphi 0, %s221
    %s224 = sphi 0, %s223
    %s238 = sphi 0, %s224
    %s242 = sphi 0, %s242
    %s244 = sphi 0, %s242
    %s245 = sphi 0, %s244
    %s259 = sphi 0, %s245
    %s263 = sphi 0, %s263
    %s265 = sphi 0, %s263
    %s266 = sphi 0, %s265
    %s280 = sphi 0, %s266
    %s284 = sphi 0, %s284
    %s286 = sphi 0, %s284
    %s287 = sphi 0, %s286
    %s301 = sphi 0, %s287
    %s307 = sphi 0, %s309
    %s310 = sphi 0, %s307
    %s311 = sphi 0, %s310
    %s327 = sphi 0, %s311
  $region4: #{tpu_custom_call.1} parent=0 // loop_header_branch
    %22 = sbr.rel (%p20) target = $region8
  $region5: #{tpu_custom_call.1} parent=0 // loop_body
    %s24 = ssub.s32 %s19, 1
    %s25 = ssub.s32 %s19, 2
    %s26 = sadd.s32 %s19, 1
    %s27 = ssub.s32 %s19, %s26
    %p28 = scmp.eq.s32.totalorder %s27, 0
    %s30 = sadd.s32 %s29, 1
    %s31 = scalar_select %p28, %s29, %s30
    %p34 = pneg %p28
    %p35 = scmp.eq.s32.totalorder %s19, 1
    %p36 = por %p34, %p35
    %p37 = scmp.ne.s32.totalorder %s29, %s32
    %p38 = scmp.eq.s32.totalorder %s19, 0
    %p39 = por %p37, %p38
    %p40 = scmp.ne.s32.totalorder %s29, %s32
    %p41 = scmp.eq.s32.totalorder %s24, 1
    %p42 = por %p40, %p41
    %p43 = scmp.ne.s32.totalorder %s32, %s33
    %p44 = scmp.eq.s32.totalorder %s24, 0
    %p45 = por %p43, %p44
    %p46 = scmp.ne.s32.totalorder %s32, %s33
    %p47 = scmp.eq.s32.totalorder %s25, 1
    %p48 = por %p46, %p47
    %p50 = scmp.ne.s32.totalorder %s33, %s49
    %p51 = scmp.eq.s32.totalorder %s25, 0
    %p52 = por %p50, %p51
    %s54 = sadd.s32 %s53, 1
    %p57 = scmp.eq.s32.totalorder %s19, 1
    %p58 = scmp.ne.s32.totalorder %s53, %s55
    %p59 = scmp.eq.s32.totalorder %s19, 0
    %p60 = por %p58, %p59
    %p61 = scmp.ne.s32.totalorder %s53, %s55
    %p62 = scmp.eq.s32.totalorder %s24, 1
    %p63 = por %p61, %p62
    %p64 = scmp.ne.s32.totalorder %s55, %s56
    %p65 = scmp.eq.s32.totalorder %s24, 0
    %p66 = por %p64, %p65
    %p67 = scmp.ne.s32.totalorder %s55, %s56
    %p68 = scmp.eq.s32.totalorder %s25, 1
    %p69 = por %p67, %p68
    %p71 = scmp.ne.s32.totalorder %s56, %s70
    %p72 = scmp.eq.s32.totalorder %s25, 0
    %p73 = por %p71, %p72
    %s75 = sadd.s32 %s74, 1
    %p78 = scmp.eq.s32.totalorder %s19, 1
    %p79 = scmp.ne.s32.totalorder %s74, %s76
    %p80 = scmp.eq.s32.totalorder %s19, 0
    %p81 = por %p79, %p80
    %p82 = scmp.ne.s32.totalorder %s74, %s76
    %p83 = scmp.eq.s32.totalorder %s24, 1
    %p84 = por %p82, %p83
    %p85 = scmp.ne.s32.totalorder %s76, %s77
    %p86 = scmp.eq.s32.totalorder %s24, 0
    %p87 = por %p85, %p86
    %p88 = scmp.ne.s32.totalorder %s76, %s77
    %p89 = scmp.eq.s32.totalorder %s25, 1
    %p90 = por %p88, %p89
    %p92 = scmp.ne.s32.totalorder %s77, %s91
    %p93 = scmp.eq.s32.totalorder %s25, 0
    %p94 = por %p92, %p93
    %s96 = sadd.s32 %s95, 1
    %p99 = scmp.eq.s32.totalorder %s19, 1
    %p100 = scmp.ne.s32.totalorder %s95, %s97
    %p101 = scmp.eq.s32.totalorder %s19, 0
    %p102 = por %p100, %p101
    %p103 = scmp.ne.s32.totalorder %s95, %s97
    %p104 = scmp.eq.s32.totalorder %s24, 1
    %p105 = por %p103, %p104
    %p106 = scmp.ne.s32.totalorder %s97, %s98
    %p107 = scmp.eq.s32.totalorder %s24, 0
    %p108 = por %p106, %p107
    %p109 = scmp.ne.s32.totalorder %s97, %s98
    %p110 = scmp.eq.s32.totalorder %s25, 1
    %p111 = por %p109, %p110
    %p113 = scmp.ne.s32.totalorder %s98, %s112
    %p114 = scmp.eq.s32.totalorder %s25, 0
    %p115 = por %p113, %p114
    %s117 = sadd.s32 %s116, 1
    %p120 = scmp.eq.s32.totalorder %s19, 1
    %p121 = scmp.ne.s32.totalorder %s116, %s118
    %p122 = scmp.eq.s32.totalorder %s19, 0
    %p123 = por %p121, %p122
    %p124 = scmp.ne.s32.totalorder %s116, %s118
    %p125 = scmp.eq.s32.totalorder %s24, 1
    %p126 = por %p124, %p125
    %p127 = scmp.ne.s32.totalorder %s118, %s119
    %p128 = scmp.eq.s32.totalorder %s24, 0
    %p129 = por %p127, %p128
    %p130 = scmp.ne.s32.totalorder %s118, %s119
    %p131 = scmp.eq.s32.totalorder %s25, 1
    %p132 = por %p130, %p131
    %p134 = scmp.ne.s32.totalorder %s119, %s133
    %p135 = scmp.eq.s32.totalorder %s25, 0
    %p136 = por %p134, %p135
    %s138 = sadd.s32 %s137, 1
    %p141 = scmp.eq.s32.totalorder %s19, 1
    %p142 = scmp.ne.s32.totalorder %s137, %s139
    %p143 = scmp.eq.s32.totalorder %s19, 0
    %p144 = por %p142, %p143
    %p145 = scmp.ne.s32.totalorder %s137, %s139
    %p146 = scmp.eq.s32.totalorder %s24, 1
    %p147 = por %p145, %p146
    %p148 = scmp.ne.s32.totalorder %s139, %s140
    %p149 = scmp.eq.s32.totalorder %s24, 0
    %p150 = por %p148, %p149
    %p151 = scmp.ne.s32.totalorder %s139, %s140
    %p152 = scmp.eq.s32.totalorder %s25, 1
    %p153 = por %p151, %p152
    %p155 = scmp.ne.s32.totalorder %s140, %s154
    %p156 = scmp.eq.s32.totalorder %s25, 0
    %p157 = por %p155, %p156
    %s159 = sadd.s32 %s158, 1
    %p162 = scmp.eq.s32.totalorder %s19, 1
    %p163 = scmp.ne.s32.totalorder %s158, %s160
    %p164 = scmp.eq.s32.totalorder %s19, 0
    %p165 = por %p163, %p164
    %p166 = scmp.ne.s32.totalorder %s158, %s160
    %p167 = scmp.eq.s32.totalorder %s24, 1
    %p168 = por %p166, %p167
    %p169 = scmp.ne.s32.totalorder %s160, %s161
    %p170 = scmp.eq.s32.totalorder %s24, 0
    %p171 = por %p169, %p170
    %p172 = scmp.ne.s32.totalorder %s160, %s161
    %p173 = scmp.eq.s32.totalorder %s25, 1
    %p174 = por %p172, %p173
    %p176 = scmp.ne.s32.totalorder %s161, %s175
    %p177 = scmp.eq.s32.totalorder %s25, 0
    %p178 = por %p176, %p177
    %s180 = sadd.s32 %s179, 1
    %p183 = scmp.eq.s32.totalorder %s19, 1
    %p184 = scmp.ne.s32.totalorder %s179, %s181
    %p185 = scmp.eq.s32.totalorder %s19, 0
    %p186 = por %p184, %p185
    %p187 = scmp.ne.s32.totalorder %s179, %s181
    %p188 = scmp.eq.s32.totalorder %s24, 1
    %p189 = por %p187, %p188
    %p190 = scmp.ne.s32.totalorder %s181, %s182
    %p191 = scmp.eq.s32.totalorder %s24, 0
    %p192 = por %p190, %p191
    %p193 = scmp.ne.s32.totalorder %s181, %s182
    %p194 = scmp.eq.s32.totalorder %s25, 1
    %p195 = por %p193, %p194
    %p197 = scmp.ne.s32.totalorder %s182, %s196
    %p198 = scmp.eq.s32.totalorder %s25, 0
    %p199 = por %p197, %p198
    %s201 = sadd.s32 %s200, 1
    %p204 = scmp.eq.s32.totalorder %s19, 1
    %p205 = scmp.ne.s32.totalorder %s200, %s202
    %p206 = scmp.eq.s32.totalorder %s19, 0
    %p207 = por %p205, %p206
    %p208 = scmp.ne.s32.totalorder %s200, %s202
    %p209 = scmp.eq.s32.totalorder %s24, 1
    %p210 = por %p208, %p209
    %p211 = scmp.ne.s32.totalorder %s202, %s203
    %p212 = scmp.eq.s32.totalorder %s24, 0
    %p213 = por %p211, %p212
    %p214 = scmp.ne.s32.totalorder %s202, %s203
    %p215 = scmp.eq.s32.totalorder %s25, 1
    %p216 = por %p214, %p215
    %p218 = scmp.ne.s32.totalorder %s203, %s217
    %p219 = scmp.eq.s32.totalorder %s25, 0
    %p220 = por %p218, %p219
    %s222 = sadd.s32 %s221, 1
    %p225 = scmp.eq.s32.totalorder %s19, 1
    %p226 = scmp.ne.s32.totalorder %s221, %s223
    %p227 = scmp.eq.s32.totalorder %s19, 0
    %p228 = por %p226, %p227
    %p229 = scmp.ne.s32.totalorder %s221, %s223
    %p230 = scmp.eq.s32.totalorder %s24, 1
    %p231 = por %p229, %p230
    %p232 = scmp.ne.s32.totalorder %s223, %s224
    %p233 = scmp.eq.s32.totalorder %s24, 0
    %p234 = por %p232, %p233
    %p235 = scmp.ne.s32.totalorder %s223, %s224
    %p236 = scmp.eq.s32.totalorder %s25, 1
    %p237 = por %p235, %p236
    %p239 = scmp.ne.s32.totalorder %s224, %s238
    %p240 = scmp.eq.s32.totalorder %s25, 0
    %p241 = por %p239, %p240
    %s243 = sadd.s32 %s242, 1
    %p246 = scmp.eq.s32.totalorder %s19, 1
    %p247 = scmp.ne.s32.totalorder %s242, %s244
    %p248 = scmp.eq.s32.totalorder %s19, 0
    %p249 = por %p247, %p248
    %p250 = scmp.ne.s32.totalorder %s242, %s244
    %p251 = scmp.eq.s32.totalorder %s24, 1
    %p252 = por %p250, %p251
    %p253 = scmp.ne.s32.totalorder %s244, %s245
    %p254 = scmp.eq.s32.totalorder %s24, 0
    %p255 = por %p253, %p254
    %p256 = scmp.ne.s32.totalorder %s244, %s245
    %p257 = scmp.eq.s32.totalorder %s25, 1
    %p258 = por %p256, %p257
    %p260 = scmp.ne.s32.totalorder %s245, %s259
    %p261 = scmp.eq.s32.totalorder %s25, 0
    %p262 = por %p260, %p261
    %s264 = sadd.s32 %s263, 1
    %p267 = scmp.eq.s32.totalorder %s19, 1
    %p268 = scmp.ne.s32.totalorder %s263, %s265
    %p269 = scmp.eq.s32.totalorder %s19, 0
    %p270 = por %p268, %p269
    %p271 = scmp.ne.s32.totalorder %s263, %s265
    %p272 = scmp.eq.s32.totalorder %s24, 1
    %p273 = por %p271, %p272
    %p274 = scmp.ne.s32.totalorder %s265, %s266
    %p275 = scmp.eq.s32.totalorder %s24, 0
    %p276 = por %p274, %p275
    %p277 = scmp.ne.s32.totalorder %s265, %s266
    %p278 = scmp.eq.s32.totalorder %s25, 1
    %p279 = por %p277, %p278
    %p281 = scmp.ne.s32.totalorder %s266, %s280
    %p282 = scmp.eq.s32.totalorder %s25, 0
    %p283 = por %p281, %p282
    %s285 = sadd.s32 %s284, 1
    %p288 = scmp.eq.s32.totalorder %s19, 1
    %p289 = scmp.ne.s32.totalorder %s284, %s286
    %p290 = scmp.eq.s32.totalorder %s19, 0
    %p291 = por %p289, %p290
    %p292 = scmp.ne.s32.totalorder %s284, %s286
    %p293 = scmp.eq.s32.totalorder %s24, 1
    %p294 = por %p292, %p293
    %p295 = scmp.ne.s32.totalorder %s286, %s287
    %p296 = scmp.eq.s32.totalorder %s24, 0
    %p297 = por %p295, %p296
    %p298 = scmp.ne.s32.totalorder %s286, %s287
    %p299 = scmp.eq.s32.totalorder %s25, 1
    %p300 = por %p298, %p299
    %p302 = scmp.ne.s32.totalorder %s287, %s301
    %p303 = scmp.eq.s32.totalorder %s25, 0
    %p304 = por %p302, %p303
    %s305 = ssub.s32 %s19, %s26
    %p306 = scmp.eq.s32.totalorder %s305, 0
    %s308 = sadd.s32 %s307, 1
    %s309 = scalar_select %p306, %s307, %s308
    %p312 = pneg %p306
    %p313 = scmp.eq.s32.totalorder %s19, 1
    %p314 = por %p312, %p313
    %p315 = scmp.ne.s32.totalorder %s307, %s310
    %p316 = scmp.eq.s32.totalorder %s19, 0
    %p317 = por %p315, %p316
    %p318 = scmp.ne.s32.totalorder %s307, %s310
    %p319 = scmp.eq.s32.totalorder %s24, 1
    %p320 = por %p318, %p319
    %p321 = scmp.ne.s32.totalorder %s310, %s311
    %p322 = scmp.eq.s32.totalorder %s24, 0
    %p323 = por %p321, %p322
    %p324 = scmp.ne.s32.totalorder %s310, %s311
    %p325 = scmp.eq.s32.totalorder %s25, 1
    %p326 = por %p324, %p325
    %p328 = scmp.ne.s32.totalorder %s311, %s327
    %p329 = scmp.eq.s32.totalorder %s25, 0
    %p330 = por %p328, %p329
    %p331 = scmp.le.s32.totalorder 1, %s19
    %p332 = scmp.lt.s32.totalorder %s19, 3
    %p333 = pnand %p331, %p332
    %p334 = pneg %p333
    // Predicated region
    $region9: #{tpu_custom_call.1} parent=5 // pred_check
      _
    $region10: #{tpu_custom_call.1} parent=5 // pred_check_branch
      %336 = sbr.rel (%p333) target = $region12
    $region11: #{tpu_custom_call.1} parent=5 // pred_region
      %s337 = ssub.s32 %s19, 1
      // Predicated region
      $region13: #{tpu_custom_call.1} parent=11 // pred_check
        %p338 = pneg %p66
      $region14: #{tpu_custom_call.1} parent=11 // pred_check_branch
        %340 = sbr.rel (%p338) target = $region16
      $region15: #{tpu_custom_call.1} parent=11 // pred_region
        _
      $region16: #{tpu_custom_call.1} parent=11 // pred_fallthru
        _
      // Predicated region
      $region17: #{tpu_custom_call.1} parent=11 // pred_check
        %p341 = pneg %p87
      $region18: #{tpu_custom_call.1} parent=11 // pred_check_branch
        %343 = sbr.rel (%p341) target = $region20
      $region19: #{tpu_custom_call.1} parent=11 // pred_region
        _
      $region20: #{tpu_custom_call.1} parent=11 // pred_fallthru
        _
      // Predicated region
      $region21: #{tpu_custom_call.1} parent=11 // pred_check
        %p344 = pneg %p108
      $region22: #{tpu_custom_call.1} parent=11 // pred_check_branch
        %346 = sbr.rel (%p344) target = $region24
      $region23: #{tpu_custom_call.1} parent=11 // pred_region
        _
      $region24: #{tpu_custom_call.1} parent=11 // pred_fallthru
        _
      // Predicated region
      $region25: #{tpu_custom_call.1} parent=11 // pred_check
        %p347 = pneg %p129
      $region26: #{tpu_custom_call.1} parent=11 // pred_check_branch
        %349 = sbr.rel (%p347) target = $region28
      $region27: #{tpu_custom_call.1} parent=11 // pred_region
        _
      $region28: #{tpu_custom_call.1} parent=11 // pred_fallthru
        _
      // Predicated region
      $region29: #{tpu_custom_call.1} parent=11 // pred_check
        %p350 = pneg %p150
      $region30: #{tpu_custom_call.1} parent=11 // pred_check_branch
        %352 = sbr.rel (%p350) target = $region32
      $region31: #{tpu_custom_call.1} parent=11 // pred_region
        _
      $region32: #{tpu_custom_call.1} parent=11 // pred_fallthru
        _
      // Predicated region
      $region33: #{tpu_custom_call.1} parent=11 // pred_check
        %p353 = pneg %p171
      $region34: #{tpu_custom_call.1} parent=11 // pred_check_branch
        %355 = sbr.rel (%p353) target = $region36
      $region35: #{tpu_custom_call.1} parent=11 // pred_region
        _
      $region36: #{tpu_custom_call.1} parent=11 // pred_fallthru
        _
      // Predicated region
      $region37: #{tpu_custom_call.1} parent=11 // pred_check
        %p356 = pneg %p192
      $region38: #{tpu_custom_call.1} parent=11 // pred_check_branch
        %358 = sbr.rel (%p356) target = $region40
      $region39: #{tpu_custom_call.1} parent=11 // pred_region
        _
      $region40: #{tpu_custom_call.1} parent=11 // pred_fallthru
        _
      // Predicated region
      $region41: #{tpu_custom_call.1} parent=11 // pred_check
        %p359 = pneg %p213
      $region42: #{tpu_custom_call.1} parent=11 // pred_check_branch
        %361 = sbr.rel (%p359) target = $region44
      $region43: #{tpu_custom_call.1} parent=11 // pred_region
        _
      $region44: #{tpu_custom_call.1} parent=11 // pred_fallthru
        _
      // Predicated region
      $region45: #{tpu_custom_call.1} parent=11 // pred_check
        %p362 = pneg %p234
      $region46: #{tpu_custom_call.1} parent=11 // pred_check_branch
        %364 = sbr.rel (%p362) target = $region48
      $region47: #{tpu_custom_call.1} parent=11 // pred_region
        _
      $region48: #{tpu_custom_call.1} parent=11 // pred_fallthru
        _
      // Predicated region
      $region49: #{tpu_custom_call.1} parent=11 // pred_check
        %p365 = pneg %p255
      $region50: #{tpu_custom_call.1} parent=11 // pred_check_branch
        %367 = sbr.rel (%p365) target = $region52
      $region51: #{tpu_custom_call.1} parent=11 // pred_region
        _
      $region52: #{tpu_custom_call.1} parent=11 // pred_fallthru
        _
      // Predicated region
      $region53: #{tpu_custom_call.1} parent=11 // pred_check
        %p368 = pneg %p276
      $region54: #{tpu_custom_call.1} parent=11 // pred_check_branch
        %370 = sbr.rel (%p368) target = $region56
      $region55: #{tpu_custom_call.1} parent=11 // pred_region
        _
      $region56: #{tpu_custom_call.1} parent=11 // pred_fallthru
        _
      // Predicated region
      $region57: #{tpu_custom_call.1} parent=11 // pred_check
        %p371 = pneg %p297
      $region58: #{tpu_custom_call.1} parent=11 // pred_check_branch
        %373 = sbr.rel (%p371) target = $region60
      $region59: #{tpu_custom_call.1} parent=11 // pred_region
        _
      $region60: #{tpu_custom_call.1} parent=11 // pred_fallthru
        _
    $region12: #{tpu_custom_call.1} parent=5 // pred_fallthru
      _
    %p374 = scmp.lt.s32.totalorder %s19, 2
    // Predicated region
    $region61: #{tpu_custom_call.1} parent=5 // pred_check
      %p375 = pneg %p374
    $region62: #{tpu_custom_call.1} parent=5 // pred_check_branch
      %377 = sbr.rel (%p375) target = $region64
    $region63: #{tpu_custom_call.1} parent=5 // pred_region
      // Predicated region
      $region65: #{tpu_custom_call.1} parent=63 // pred_check
        %p378 = pneg %p39
      $region66: #{tpu_custom_call.1} parent=63 // pred_check_branch
        %380 = sbr.rel (%p378) target = $region68
      $region67: #{tpu_custom_call.1} parent=63 // pred_region
        %s381 = smul.u32 2, %s19
        %p382 = scmp.lt.s32.totalorder %s381, 3
        %s383 = scalar_select %p382, %s381, 3
        %s384 = smul.addr %s383, 4
        %s385 = scalar_lea.vmem %s0, %s384
        %s386 = smul.u32 2, %s19
      $region68: #{tpu_custom_call.1} parent=63 // pred_fallthru
        _
    $region64: #{tpu_custom_call.1} parent=5 // pred_fallthru
      _
    %p387 = scmp.le.s32.totalorder 1, %s19
    %p388 = scmp.lt.s32.totalorder %s19, 3
    %p389 = pnand %p387, %p388
    %p390 = pneg %p389
    // Predicated region
    $region69: #{tpu_custom_call.1} parent=5 // pred_check
      _
    $region70: #{tpu_custom_call.1} parent=5 // pred_check_branch
      %392 = sbr.rel (%p389) target = $region72
    $region71: #{tpu_custom_call.1} parent=5 // pred_region
      %s393 = ssub.s32 %s19, 1
      %s394 = smul.u32 2, %s24
      %p395 = scmp.lt.s32.totalorder %s394, 3
      %s396 = scalar_select %p395, %s394, 3
      %s397 = smul.addr %s396, 4
      %s398 = scalar_lea.vmem %s0, %s397
      %p399 = pneg %p45
      %p400 = pneg %p42
      %p401 = pneg %p66
      %p402 = pneg %p63
      %p403 = pneg %p87
      %p404 = pneg %p84
      %p405 = pneg %p108
      %p406 = pneg %p105
      %p407 = pneg %p129
      %p408 = pneg %p126
      %p409 = pneg %p150
      %p410 = pneg %p147
      %p411 = pneg %p171
      %p412 = pneg %p168
      %p413 = pneg %p192
      %p414 = pneg %p189
      %p415 = pneg %p213
      %p416 = pneg %p210
      %p417 = pneg %p234
      %p418 = pneg %p231
      %p419 = pneg %p255
      %p420 = pneg %p252
      %p421 = pneg %p276
      %p422 = pneg %p273
      %p423 = pneg %p297
      %p424 = pneg %p294
      %p425 = pneg %p323
      %p426 = pneg %p320
      %s427 = smul.u32 2, %s24
      %p428 = scmp.lt.s32.totalorder %s427, 3
      %s429 = scalar_select %p428, %s427, 3
      %s430 = smul.addr %s429, 8
      %s431 = scalar_lea.vmem %s13, %s430
      %s432 = smul.u32 2, %s24
      %p433 = scmp.lt.s32.totalorder %s432, 3
      %s434 = scalar_select %p433, %s432, 3
      %s435 = smul.addr %s434, 4
      %s436 = scalar_lea.vmem %s0, %s435
      %s437 = smul.u32 2, %s24
      %s438 = smul.u32 2, %s24
      %p439 = scmp.lt.s32.totalorder %s438, 3
      %s440 = scalar_select %p439, %s438, 3
      %s441 = smul.addr %s440, 8
      %s442 = scalar_lea.vmem %s13, %s441
      %s443 = smul.u32 2, %s24
      %v445 = vld [vmem:[%s436] sm:$0xf]
      %v446 = vld [vmem:[%s436 + $0x4] sm:$0xf]
      %v447 = vld [vmem:[%s1] sm:$0xf]
      %v448 = vld [vmem:[%s1 + $0x4] sm:$0xf]
      %v449 = vld [vmem:[%s1 + $0x8] sm:$0xf]
      %v450 = vld [vmem:[%s1 + $0xc] sm:$0xf]
      %v451 = vld [vmem:[%s2] sm:$0x1]
      %v453 = vlaneseq
      %v454 = vshrl.u32 %v453, 7
      %v455 = vsub.s32 0, %v454
      %v456 = vrot.slane %v451, %v455
      %v460 = vunpack.c.l.b16 %v445
      %v461 = vunpack.c.l.b16 %v446
      %v462 = vpack.c.b16 %v461, %v460
      %v467 = vunpack.c.l.b16 %v447
      %v468 = vunpack.c.l.b16 %v448
      %v469 = vunpack.c.l.b16 %v449
      %v470 = vunpack.c.l.b16 %v450
      %v471 = vpack.c.b16 %v468, %v467
      %v472 = vpack.c.b16 %v470, %v469
      %vm475 = vcmask 261120
      %v477 = vsel %vm475, %v462, 0
      %479 = vmatprep.subr.bf16.mxu0 0
      %480 = vmatpush1.bf16.msra.mxu0 %v471
      %481 = vmatprep.subr.bf16.mxu0 0
      %482 = vmatpush1.bf16.msra.mxu0 %v472
      %483 = vmatprep.subr.bf16.mxu0 0
      %484 = vmatpush1.bf16.msra.mxu0 0
      %485 = vmatprep.subr.bf16.mxu0 0
      %486 = vmatpush1.bf16.msra.mxu0 0
      %487 = vmatprep.subr.bf16.mxu0 0
      %488 = vmatpush1.bf16.msra.mxu0 0
      %489 = vmatprep.subr.bf16.mxu0 0
      %490 = vmatpush1.bf16.msra.mxu0 0
      %491 = vmatprep.subr.bf16.mxu0 0
      %492 = vmatpush1.bf16.msra.mxu0 0
      %493 = vmatprep.subr.bf16.mxu0 0
      %494 = vmatpush1.bf16.msra.mxu0 0
      %495 = vmatprep.subr.bf16.mxu0 0
      %496 = vmatpush1.bf16.msra.mxu0 0
      %497 = vmatprep.subr.bf16.mxu0 0
      %498 = vmatpush1.bf16.msra.mxu0 0
      %499 = vmatprep.subr.bf16.mxu0 0
      %500 = vmatpush1.bf16.msra.mxu0 0
      %501 = vmatprep.subr.bf16.mxu0 0
      %502 = vmatpush1.bf16.msra.mxu0 0
      %503 = vmatprep.subr.bf16.mxu0 0
      %504 = vmatpush1.bf16.msra.mxu0 0
      %505 = vmatprep.subr.bf16.mxu0 0
      %506 = vmatpush1.bf16.msra.mxu0 0
      %507 = vmatprep.subr.bf16.mxu0 0
      %508 = vmatpush1.bf16.msra.mxu0 0
      %509 = vmatprep.subr.bf16.mxu0 0
      %510 = vmatpush1.bf16.msra.mxu0 0
      %511 = vmatprep.mubr.bf16.mxu0 0
      %512 = vmatmul.mubr.bf16.gmra.mrb[0].mxu0 %v477
      %v513 = vpop.f32.mrb[0].mxu0
      %v514 = vadd.f32 %v456, %v513
      %v515 = vpop.f32.mrb[0].mxu0
      %v516 = vpop.f32.mrb[0].mxu0
      %v517 = vadd.f32 %v456, %v516
      %v518 = vpop.f32.mrb[0].mxu0
      %519 = vdwg.mxu0
      %v520 = vmax.f32 %v514, 0.0
      %v521 = vmax.f32 %v517, 0.0
      %v522 = vld [vmem:[%s3] sm:$0xf]
      %v523 = vld [vmem:[%s3 + $0x4] sm:$0xf]
      %v524 = vld [vmem:[%s3 + $0x8] sm:$0xf]
      %v525 = vld [vmem:[%s3 + $0xc] sm:$0xf]
      %v526 = vld [vmem:[%s3 + $0x10] sm:$0xf]
      %v527 = vld [vmem:[%s3 + $0x14] sm:$0xf]
      %v528 = vld [vmem:[%s3 + $0x18] sm:$0xf]
      %v529 = vld [vmem:[%s3 + $0x1c] sm:$0xf]
      %v530 = vpack.c.bf16 %v521, %v520
      %v531 = vld [vmem:[%s4] sm:$0x1]
      %v533 = vlaneseq
      %v534 = vshrl.u32 %v533, 7
      %v535 = vsub.s32 0, %v534
      %v536 = vrot.slane %v531, %v535
      %v546 = vunpack.c.l.b16 %v522
      %v547 = vunpack.c.l.b16 %v523
      %v548 = vunpack.c.l.b16 %v524
      %v549 = vunpack.c.l.b16 %v525
      %v550 = vunpack.c.l.b16 %v526
      %v551 = vunpack.c.l.b16 %v527
      %v552 = vunpack.c.l.b16 %v528
      %v553 = vunpack.c.l.b16 %v529
      %v554 = vpack.c.b16 %v547, %v546
      %v555 = vpack.c.b16 %v549, %v548
      %v556 = vpack.c.b16 %v551, %v550
      %v557 = vpack.c.b16 %v553, %v552
      %vm562 = vcmask 523264
      %v564 = vsel %vm562, %v530, 0
      %566 = vmatprep.subr.bf16.mxu0 0
      %567 = vmatpush1.bf16.msra.mxu0 %v554
      %568 = vmatprep.subr.bf16.mxu0 0
      %569 = vmatpush1.bf16.msra.mxu0 %v555
      %570 = vmatprep.subr.bf16.mxu0 0
      %571 = vmatpush1.bf16.msra.mxu0 %v556
      %572 = vmatprep.subr.bf16.mxu0 0
      %573 = vmatpush1.bf16.msra.mxu0 %v557
      %574 = vmatprep.subr.bf16.mxu0 0
      %575 = vmatpush1.bf16.msra.mxu0 0
      %576 = vmatprep.subr.bf16.mxu0 0
      %577 = vmatpush1.bf16.msra.mxu0 0
      %578 = vmatprep.subr.bf16.mxu0 0
      %579 = vmatpush1.bf16.msra.mxu0 0
      %580 = vmatprep.subr.bf16.mxu0 0
      %581 = vmatpush1.bf16.msra.mxu0 0
      %582 = vmatprep.subr.bf16.mxu0 0
      %583 = vmatpush1.bf16.msra.mxu0 0
      %584 = vmatprep.subr.bf16.mxu0 0
      %585 = vmatpush1.bf16.msra.mxu0 0
      %586 = vmatprep.subr.bf16.mxu0 0
      %587 = vmatpush1.bf16.msra.mxu0 0
      %588 = vmatprep.subr.bf16.mxu0 0
      %589 = vmatpush1.bf16.msra.mxu0 0
      %590 = vmatprep.subr.bf16.mxu0 0
      %591 = vmatpush1.bf16.msra.mxu0 0
      %592 = vmatprep.subr.bf16.mxu0 0
      %593 = vmatpush1.bf16.msra.mxu0 0
      %594 = vmatprep.subr.bf16.mxu0 0
      %595 = vmatpush1.bf16.msra.mxu0 0
      %596 = vmatprep.subr.bf16.mxu0 0
      %597 = vmatpush1.bf16.msra.mxu0 0
      %598 = vmatprep.mubr.bf16.mxu0 0
      %599 = vmatmul.mubr.bf16.gmra.mrb[0].mxu0 %v564
      %v600 = vpop.f32.mrb[0].mxu0
      %v601 = vadd.f32 %v536, %v600
      %v602 = vpop.f32.mrb[0].mxu0
      %v603 = vpop.f32.mrb[0].mxu0
      %v604 = vadd.f32 %v536, %v603
      %v605 = vpop.f32.mrb[0].mxu0
      %606 = vdwg.mxu0
      %v607 = vmax.f32 %v601, 0.0
      %v608 = vmax.f32 %v604, 0.0
      %v609 = vld [vmem:[%s5] sm:$0xf]
      %v610 = vld [vmem:[%s5 + $0x4] sm:$0xf]
      %v611 = vld [vmem:[%s5 + $0x8] sm:$0xf]
      %v612 = vld [vmem:[%s5 + $0xc] sm:$0xf]
      %v613 = vld [vmem:[%s5 + $0x10] sm:$0xf]
      %v614 = vld [vmem:[%s5 + $0x14] sm:$0xf]
      %v615 = vld [vmem:[%s5 + $0x18] sm:$0xf]
      %v616 = vld [vmem:[%s5 + $0x1c] sm:$0xf]
      %v617 = vpack.c.bf16 %v608, %v607
      %v618 = vld [vmem:[%s6] sm:$0x1]
      %v620 = vlaneseq
      %v621 = vshrl.u32 %v620, 7
      %v622 = vsub.s32 0, %v621
      %v623 = vrot.slane %v618, %v622
      %v633 = vunpack.c.l.b16 %v609
      %v634 = vunpack.c.l.b16 %v610
      %v635 = vunpack.c.l.b16 %v611
      %v636 = vunpack.c.l.b16 %v612
      %v637 = vunpack.c.l.b16 %v613
      %v638 = vunpack.c.l.b16 %v614
      %v639 = vunpack.c.l.b16 %v615
      %v640 = vunpack.c.l.b16 %v616
      %v641 = vpack.c.b16 %v634, %v633
      %v642 = vpack.c.b16 %v636, %v635
      %v643 = vpack.c.b16 %v638, %v637
      %v644 = vpack.c.b16 %v640, %v639
      %v650 = vsel %vm562, %v617, 0
      %652 = vmatprep.subr.bf16.mxu0 0
      %653 = vmatpush1.bf16.msra.mxu0 %v641
      %654 = vmatprep.subr.bf16.mxu0 0
      %655 = vmatpush1.bf16.msra.mxu0 %v642
      %656 = vmatprep.subr.bf16.mxu0 0
      %657 = vmatpush1.bf16.msra.mxu0 %v643
      %658 = vmatprep.subr.bf16.mxu0 0
      %659 = vmatpush1.bf16.msra.mxu0 %v644
      %660 = vmatprep.subr.bf16.mxu0 0
      %661 = vmatpush1.bf16.msra.mxu0 0
      %662 = vmatprep.subr.bf16.mxu0 0
      %663 = vmatpush1.bf16.msra.mxu0 0
      %664 = vmatprep.subr.bf16.mxu0 0
      %665 = vmatpush1.bf16.msra.mxu0 0
      %666 = vmatprep.subr.bf16.mxu0 0
      %667 = vmatpush1.bf16.msra.mxu0 0
      %668 = vmatprep.subr.bf16.mxu0 0
      %669 = vmatpush1.bf16.msra.mxu0 0
      %670 = vmatprep.subr.bf16.mxu0 0
      %671 = vmatpush1.bf16.msra.mxu0 0
      %672 = vmatprep.subr.bf16.mxu0 0
      %673 = vmatpush1.bf16.msra.mxu0 0
      %674 = vmatprep.subr.bf16.mxu0 0
      %675 = vmatpush1.bf16.msra.mxu0 0
      %676 = vmatprep.subr.bf16.mxu0 0
      %677 = vmatpush1.bf16.msra.mxu0 0
      %678 = vmatprep.subr.bf16.mxu0 0
      %679 = vmatpush1.bf16.msra.mxu0 0
      %680 = vmatprep.subr.bf16.mxu0 0
      %681 = vmatpush1.bf16.msra.mxu0 0
      %682 = vmatprep.subr.bf16.mxu0 0
      %683 = vmatpush1.bf16.msra.mxu0 0
      %684 = vmatprep.mubr.bf16.mxu0 0
      %685 = vmatmul.mubr.bf16.gmra.mrb[0].mxu0 %v650
      %v686 = vpop.f32.mrb[0].mxu0
      %v687 = vadd.f32 %v623, %v686
      %v688 = vpop.f32.mrb[0].mxu0
      %v689 = vpop.f32.mrb[0].mxu0
      %v690 = vadd.f32 %v623, %v689
      %v691 = vpop.f32.mrb[0].mxu0
      %692 = vdwg.mxu0
      %v693 = vmax.f32 %v687, 0.0
      %v694 = vmax.f32 %v690, 0.0
      %v695 = vld [vmem:[%s7] sm:$0xf]
      %v696 = vld [vmem:[%s7 + $0x4] sm:$0xf]
      %v697 = vld [vmem:[%s7 + $0x8] sm:$0xf]
      %v698 = vld [vmem:[%s7 + $0xc] sm:$0xf]
      %v699 = vld [vmem:[%s7 + $0x10] sm:$0xf]
      %v700 = vld [vmem:[%s7 + $0x14] sm:$0xf]
      %v701 = vld [vmem:[%s7 + $0x18] sm:$0xf]
      %v702 = vld [vmem:[%s7 + $0x1c] sm:$0xf]
      %v703 = vpack.c.bf16 %v694, %v693
      %v704 = vld [vmem:[%s8] sm:$0x1]
      %v706 = vlaneseq
      %v707 = vshrl.u32 %v706, 7
      %v708 = vsub.s32 0, %v707
      %v709 = vrot.slane %v704, %v708
      %v719 = vunpack.c.l.b16 %v695
      %v720 = vunpack.c.l.b16 %v696
      %v721 = vunpack.c.l.b16 %v697
      %v722 = vunpack.c.l.b16 %v698
      %v723 = vunpack.c.l.b16 %v699
      %v724 = vunpack.c.l.b16 %v700
      %v725 = vunpack.c.l.b16 %v701
      %v726 = vunpack.c.l.b16 %v702
      %v727 = vpack.c.b16 %v720, %v719
      %v728 = vpack.c.b16 %v722, %v721
      %v729 = vpack.c.b16 %v724, %v723
      %v730 = vpack.c.b16 %v726, %v725
      %v736 = vsel %vm562, %v703, 0
      %738 = vmatprep.subr.bf16.mxu0 0
      %739 = vmatpush1.bf16.msra.mxu0 %v727
      %740 = vmatprep.subr.bf16.mxu0 0
      %741 = vmatpush1.bf16.msra.mxu0 %v728
      %742 = vmatprep.subr.bf16.mxu0 0
      %743 = vmatpush1.bf16.msra.mxu0 %v729
      %744 = vmatprep.subr.bf16.mxu0 0
      %745 = vmatpush1.bf16.msra.mxu0 %v730
      %746 = vmatprep.subr.bf16.mxu0 0
      %747 = vmatpush1.bf16.msra.mxu0 0
      %748 = vmatprep.subr.bf16.mxu0 0
      %749 = vmatpush1.bf16.msra.mxu0 0
      %750 = vmatprep.subr.bf16.mxu0 0
      %751 = vmatpush1.bf16.msra.mxu0 0
      %752 = vmatprep.subr.bf16.mxu0 0
      %753 = vmatpush1.bf16.msra.mxu0 0
      %754 = vmatprep.subr.bf16.mxu0 0
      %755 = vmatpush1.bf16.msra.mxu0 0
      %756 = vmatprep.subr.bf16.mxu0 0
      %757 = vmatpush1.bf16.msra.mxu0 0
      %758 = vmatprep.subr.bf16.mxu0 0
      %759 = vmatpush1.bf16.msra.mxu0 0
      %760 = vmatprep.subr.bf16.mxu0 0
      %761 = vmatpush1.bf16.msra.mxu0 0
      %762 = vmatprep.subr.bf16.mxu0 0
      %763 = vmatpush1.bf16.msra.mxu0 0
      %764 = vmatprep.subr.bf16.mxu0 0
      %765 = vmatpush1.bf16.msra.mxu0 0
      %766 = vmatprep.subr.bf16.mxu0 0
      %767 = vmatpush1.bf16.msra.mxu0 0
      %768 = vmatprep.subr.bf16.mxu0 0
      %769 = vmatpush1.bf16.msra.mxu0 0
      %770 = vmatprep.mubr.bf16.mxu0 0
      %771 = vmatmul.mubr.bf16.gmra.mrb[0].mxu0 %v736
      %v772 = vpop.f32.mrb[0].mxu0
      %v773 = vadd.f32 %v709, %v772
      %v774 = vpop.f32.mrb[0].mxu0
      %v775 = vpop.f32.mrb[0].mxu0
      %v776 = vadd.f32 %v709, %v775
      %v777 = vpop.f32.mrb[0].mxu0
      %778 = vdwg.mxu0
      %v779 = vmax.f32 %v773, 0.0
      %v780 = vmax.f32 %v776, 0.0
      %v781 = vld [vmem:[%s9] sm:$0xf]
      %v782 = vld [vmem:[%s9 + $0x4] sm:$0xf]
      %v783 = vld [vmem:[%s9 + $0x8] sm:$0xf]
      %v784 = vld [vmem:[%s9 + $0xc] sm:$0xf]
      %v785 = vld [vmem:[%s9 + $0x10] sm:$0xf]
      %v786 = vld [vmem:[%s9 + $0x14] sm:$0xf]
      %v787 = vld [vmem:[%s9 + $0x18] sm:$0xf]
      %v788 = vld [vmem:[%s9 + $0x1c] sm:$0xf]
      %v789 = vpack.c.bf16 %v780, %v779
      %v790 = vld [vmem:[%s10] sm:$0x1]
      %v792 = vlaneseq
      %v793 = vshrl.u32 %v792, 7
      %v794 = vsub.s32 0, %v793
      %v795 = vrot.slane %v790, %v794
      %v805 = vunpack.c.l.b16 %v781
      %v806 = vunpack.c.l.b16 %v782
      %v807 = vunpack.c.l.b16 %v783
      %v808 = vunpack.c.l.b16 %v784
      %v809 = vunpack.c.l.b16 %v785
      %v810 = vunpack.c.l.b16 %v786
      %v811 = vunpack.c.l.b16 %v787
      %v812 = vunpack.c.l.b16 %v788
      %v813 = vpack.c.b16 %v806, %v805
      %v814 = vpack.c.b16 %v808, %v807
      %v815 = vpack.c.b16 %v810, %v809
      %v816 = vpack.c.b16 %v812, %v811
      %v822 = vsel %vm562, %v789, 0
      %824 = vmatprep.subr.bf16.mxu0 0
      %825 = vmatpush1.bf16.msra.mxu0 %v813
      %826 = vmatprep.subr.bf16.mxu0 0
      %827 = vmatpush1.bf16.msra.mxu0 %v814
      %828 = vmatprep.subr.bf16.mxu0 0
      %829 = vmatpush1.bf16.msra.mxu0 %v815
      %830 = vmatprep.subr.bf16.mxu0 0
      %831 = vmatpush1.bf16.msra.mxu0 %v816
      %832 = vmatprep.subr.bf16.mxu0 0
      %833 = vmatpush1.bf16.msra.mxu0 0
      %834 = vmatprep.subr.bf16.mxu0 0
      %835 = vmatpush1.bf16.msra.mxu0 0
      %836 = vmatprep.subr.bf16.mxu0 0
      %837 = vmatpush1.bf16.msra.mxu0 0
      %838 = vmatprep.subr.bf16.mxu0 0
      %839 = vmatpush1.bf16.msra.mxu0 0
      %840 = vmatprep.subr.bf16.mxu0 0
      %841 = vmatpush1.bf16.msra.mxu0 0
      %842 = vmatprep.subr.bf16.mxu0 0
      %843 = vmatpush1.bf16.msra.mxu0 0
      %844 = vmatprep.subr.bf16.mxu0 0
      %845 = vmatpush1.bf16.msra.mxu0 0
      %846 = vmatprep.subr.bf16.mxu0 0
      %847 = vmatpush1.bf16.msra.mxu0 0
      %848 = vmatprep.subr.bf16.mxu0 0
      %849 = vmatpush1.bf16.msra.mxu0 0
      %850 = vmatprep.subr.bf16.mxu0 0
      %851 = vmatpush1.bf16.msra.mxu0 0
      %852 = vmatprep.subr.bf16.mxu0 0
      %853 = vmatpush1.bf16.msra.mxu0 0
      %854 = vmatprep.subr.bf16.mxu0 0
      %855 = vmatpush1.bf16.msra.mxu0 0
      %856 = vmatprep.mubr.bf16.mxu0 0
      %857 = vmatmul.mubr.bf16.gmra.mrb[0].mxu0 %v822
      %v858 = vpop.f32.mrb[0].mxu0
      %v859 = vadd.f32 %v795, %v858
      %v860 = vpop.f32.mrb[0].mxu0
      %v861 = vpop.f32.mrb[0].mxu0
      %v862 = vadd.f32 %v795, %v861
      %v863 = vpop.f32.mrb[0].mxu0
      %864 = vdwg.mxu0
      %v865 = vld [vmem:[%s11] sm:$0xff]
      %v866 = vld [vmem:[%s11 + $0x8] sm:$0xff]
      %v867 = vld [vmem:[%s11 + $0x10] sm:$0x11]
      %v868 = vpack.c.bf16 %v862, %v859
      %v872 = vunpack.c.l.b16 %v865
      %v873 = vunpack.c.h.b16 %v865
      %v874 = vunpack.c.l.b16 %v866
      %v875 = vunpack.c.h.b16 %v866
      %v876 = vunpack.c.l.b16 %v867
      %v877 = vunpack.c.h.b16 %v867
      %v878 = vpack.c.b16 %v874, %v872
      %v879 = vpack.c.b16 %v875, %v873
      %v880 = vpack.c.b16 %v876, %v876
      %v881 = vpack.c.b16 %v877, %v877
      %vm884 = vcmask 146432
      %v886 = vsel %vm884, %v868, 0
      %vm888 = vcmask 1040384
      %v890 = vsel %vm888, %v880, 0
      %v893 = vsel %vm888, %v881, 0
      %895 = vmatprep.subr.bf16.mxu0 %v879
      %896 = vmatpush1.bf16.msra.mxu0 %v878
      %897 = vmatprep.subr.bf16.mxu0 %v893
      %898 = vmatpush1.bf16.msra.mxu0 %v890
      %899 = vmatprep.subr.bf16.mxu0 0
      %900 = vmatpush1.bf16.msra.mxu0 0
      %901 = vmatprep.subr.bf16.mxu0 0
      %902 = vmatpush1.bf16.msra.mxu0 0
      %903 = vmatprep.subr.bf16.mxu0 0
      %904 = vmatpush1.bf16.msra.mxu0 0
      %905 = vmatprep.subr.bf16.mxu0 0
      %906 = vmatpush1.bf16.msra.mxu0 0
      %907 = vmatprep.subr.bf16.mxu0 0
      %908 = vmatpush1.bf16.msra.mxu0 0
      %909 = vmatprep.subr.bf16.mxu0 0
      %910 = vmatpush1.bf16.msra.mxu0 0
      %911 = vmatprep.subr.bf16.mxu0 0
      %912 = vmatpush1.bf16.msra.mxu0 0
      %913 = vmatprep.subr.bf16.mxu0 0
      %914 = vmatpush1.bf16.msra.mxu0 0
      %915 = vmatprep.subr.bf16.mxu0 0
      %916 = vmatpush1.bf16.msra.mxu0 0
      %917 = vmatprep.subr.bf16.mxu0 0
      %918 = vmatpush1.bf16.msra.mxu0 0
      %919 = vmatprep.subr.bf16.mxu0 0
      %920 = vmatpush1.bf16.msra.mxu0 0
      %921 = vmatprep.subr.bf16.mxu0 0
      %922 = vmatpush1.bf16.msra.mxu0 0
      %923 = vmatprep.subr.bf16.mxu0 0
      %924 = vmatpush1.bf16.msra.mxu0 0
      %925 = vmatprep.subr.bf16.mxu0 0
      %926 = vmatpush1.bf16.msra.mxu0 0
      %927 = vmatprep.mubr.bf16.mxu0 0
      %928 = vmatmul.mubr.bf16.gmra.mrb[0].mxu0 %v886
      %v929 = vpop.f32.mrb[0].mxu0
      %v930 = vadd.f32 0.0, %v929
      %v931 = vpop.f32.mrb[0].mxu0
      %v932 = vadd.f32 0.0, %v931
      %v933 = vpop.f32.mrb[0].mxu0
      %v934 = vadd.f32 0.0, %v933
      %v935 = vpop.f32.mrb[0].mxu0
      %v936 = vadd.f32 0.0, %v935
      %937 = vdwg.mxu0
      %v938 = vmax.f32 %v930, %v932
      %939 = vmax.xlane.f32.xlu0 %v938
      %v940 = vpop.xlane.xlu0 %939
      %v941 = vmax.f32 %v934, %v936
      %942 = vmax.xlane.f32.xlu0 %v941
      %v943 = vpop.xlane.xlu0 %942
      %v944 = vsub.f32 %v930, %v940
      %v945 = vsub.f32 %v932, %v940
      %v946 = vsub.f32 %v934, %v943
      %v947 = vsub.f32 %v936, %v943
      %v948 = vmul.f32 %v944, 1.442695
      %v949 = vpow.pop %v948
      %v950 = vmul.f32 %v945, 1.442695
      %v951 = vpow.pop %v950
      %v952 = vmul.f32 %v946, 1.442695
      %v953 = vpow.pop %v952
      %v954 = vmul.f32 %v947, 1.442695
      %v955 = vpow.pop %v954
      %v956 = vld [vmem:[%s12] sm:$0xf]
      %v957 = vld [vmem:[%s12 + $0x4] sm:$0xf]
      %v958 = vld [vmem:[%s12 + $0x8] sm:$0xf]
      %v959 = vld [vmem:[%s12 + $0xc] sm:$0xf]
      %v960 = vld [vmem:[%s12 + $0x10] sm:$0xf]
      %v961 = vld [vmem:[%s12 + $0x14] sm:$0xf]
      %v962 = vld [vmem:[%s12 + $0x18] sm:$0xf]
      %v963 = vld [vmem:[%s12 + $0x1c] sm:$0xf]
      %v964 = vld [vmem:[%s12 + $0x20] sm:$0xf]
      %v965 = vld [vmem:[%s12 + $0x24] sm:$0xf]
      %v966 = vld [vmem:[%s12 + $0x28] sm:$0xf]
      %v967 = vld [vmem:[%s12 + $0x2c] sm:$0xf]
      %v968 = vld [vmem:[%s12 + $0x30] sm:$0xf]
      %v969 = vld [vmem:[%s12 + $0x34] sm:$0xf]
      %v970 = vld [vmem:[%s12 + $0x38] sm:$0xf]
      %v971 = vld [vmem:[%s12 + $0x3c] sm:$0xf]
      %v972 = vld [vmem:[%s12 + $0x40] sm:$0xf]
      %v973 = vld [vmem:[%s12 + $0x44] sm:$0xf]
      %v974 = vld [vmem:[%s12 + $0x48] sm:$0xf]
      %v975 = vld [vmem:[%s12 + $0x4c] sm:$0xf]
      %v976 = vld [vmem:[%s12 + $0x50] sm:$0xf]
      %v977 = vld [vmem:[%s12 + $0x54] sm:$0xf]
      %v978 = vld [vmem:[%s12 + $0x58] sm:$0xf]
      %v979 = vld [vmem:[%s12 + $0x5c] sm:$0xf]
      %v980 = vld [vmem:[%s12 + $0x60] sm:$0xf]
      %v981 = vld [vmem:[%s12 + $0x64] sm:$0xf]
      %v982 = vld [vmem:[%s12 + $0x68] sm:$0xf]
      %v983 = vld [vmem:[%s12 + $0x6c] sm:$0xf]
      %v984 = vld [vmem:[%s12 + $0x70] sm:$0xf]
      %v985 = vld [vmem:[%s12 + $0x74] sm:$0xf]
      %v986 = vld [vmem:[%s12 + $0x78] sm:$0xf]
      %v987 = vld [vmem:[%s12 + $0x7c] sm:$0xf]
      %v988 = vpack.c.bf16 %v953, %v949
      %v989 = vpack.c.bf16 %v955, %v951
      %v1022 = vunpack.c.l.b16 %v956
      %v1023 = vunpack.c.l.b16 %v957
      %v1024 = vunpack.c.l.b16 %v958
      %v1025 = vunpack.c.l.b16 %v959
      %v1026 = vunpack.c.l.b16 %v960
      %v1027 = vunpack.c.l.b16 %v961
      %v1028 = vunpack.c.l.b16 %v962
      %v1029 = vunpack.c.l.b16 %v963
      %v1030 = vunpack.c.l.b16 %v964
      %v1031 = vunpack.c.l.b16 %v965
      %v1032 = vunpack.c.l.b16 %v966
      %v1033 = vunpack.c.l.b16 %v967
      %v1034 = vunpack.c.l.b16 %v968
      %v1035 = vunpack.c.l.b16 %v969
      %v1036 = vunpack.c.l.b16 %v970
      %v1037 = vunpack.c.l.b16 %v971
      %v1038 = vunpack.c.l.b16 %v972
      %v1039 = vunpack.c.l.b16 %v973
      %v1040 = vunpack.c.l.b16 %v974
      %v1041 = vunpack.c.l.b16 %v975
      %v1042 = vunpack.c.l.b16 %v976
      %v1043 = vunpack.c.l.b16 %v977
      %v1044 = vunpack.c.l.b16 %v978
      %v1045 = vunpack.c.l.b16 %v979
      %v1046 = vunpack.c.l.b16 %v980
      %v1047 = vunpack.c.l.b16 %v981
      %v1048 = vunpack.c.l.b16 %v982
      %v1049 = vunpack.c.l.b16 %v983
      %v1050 = vunpack.c.l.b16 %v984
      %v1051 = vunpack.c.l.b16 %v985
      %v1052 = vunpack.c.l.b16 %v986
      %v1053 = vunpack.c.l.b16 %v987
      %v1054 = vpack.c.b16 %v1023, %v1022
      %v1055 = vpack.c.b16 %v1025, %v1024
      %v1056 = vpack.c.b16 %v1027, %v1026
      %v1057 = vpack.c.b16 %v1029, %v1028
      %v1058 = vpack.c.b16 %v1031, %v1030
      %v1059 = vpack.c.b16 %v1033, %v1032
      %v1060 = vpack.c.b16 %v1035, %v1034
      %v1061 = vpack.c.b16 %v1037, %v1036
      %v1062 = vpack.c.b16 %v1039, %v1038
      %v1063 = vpack.c.b16 %v1041, %v1040
      %v1064 = vpack.c.b16 %v1043, %v1042
      %v1065 = vpack.c.b16 %v1045, %v1044
      %v1066 = vpack.c.b16 %v1047, %v1046
      %v1067 = vpack.c.b16 %v1049, %v1048
      %v1068 = vpack.c.b16 %v1051, %v1050
      %v1069 = vpack.c.b16 %v1053, %v1052
      %1086 = vmatprep.subr.bf16.mxu0 0
      %1087 = vmatpush1.bf16.msra.mxu0 %v1054
      %1088 = vmatprep.subr.bf16.mxu0 0
      %1089 = vmatpush1.bf16.msra.mxu0 %v1055
      %1090 = vmatprep.subr.bf16.mxu0 0
      %1091 = vmatpush1.bf16.msra.mxu0 %v1056
      %1092 = vmatprep.subr.bf16.mxu0 0
      %1093 = vmatpush1.bf16.msra.mxu0 %v1057
      %1094 = vmatprep.subr.bf16.mxu0 0
      %1095 = vmatpush1.bf16.msra.mxu0 %v1058
      %1096 = vmatprep.subr.bf16.mxu0 0
      %1097 = vmatpush1.bf16.msra.mxu0 %v1059
      %1098 = vmatprep.subr.bf16.mxu0 0
      %1099 = vmatpush1.bf16.msra.mxu0 %v1060
      %1100 = vmatprep.subr.bf16.mxu0 0
      %1101 = vmatpush1.bf16.msra.mxu0 %v1061
      %1102 = vmatprep.subr.bf16.mxu0 0
      %1103 = vmatpush1.bf16.msra.mxu0 %v1062
      %1104 = vmatprep.subr.bf16.mxu0 0
      %1105 = vmatpush1.bf16.msra.mxu0 %v1063
      %1106 = vmatprep.subr.bf16.mxu0 0
      %1107 = vmatpush1.bf16.msra.mxu0 %v1064
      %1108 = vmatprep.subr.bf16.mxu0 0
      %1109 = vmatpush1.bf16.msra.mxu0 %v1065
      %1110 = vmatprep.subr.bf16.mxu0 0
      %1111 = vmatpush1.bf16.msra.mxu0 %v1066
      %1112 = vmatprep.subr.bf16.mxu0 0
      %1113 = vmatpush1.bf16.msra.mxu0 %v1067
      %1114 = vmatprep.subr.bf16.mxu0 0
      %1115 = vmatpush1.bf16.msra.mxu0 %v1068
      %1116 = vmatprep.subr.bf16.mxu0 0
      %1117 = vmatpush1.bf16.msra.mxu0 %v1069
      %1118 = vmatprep.mubr.bf16.mxu0 %v989
      %1119 = vmatmul.mubr.bf16.gmra.mrb[0].mxu0 %v988
      %v1120 = vpop.f32.mrb[0].mxu0
      %v1121 = vadd.f32 0.0, %v1120
      %v1122 = vpop.f32.mrb[0].mxu0
      %v1123 = vpop.f32.mrb[0].mxu0
      %v1124 = vadd.f32 0.0, %v1123
      %v1125 = vpop.f32.mrb[0].mxu0
      %1126 = vdwg.mxu0
      %v1127 = vrcp.pop %v1121
      %v1128 = vrcp.pop %v1124
      %1130 = vset.pattern.permute.xlu0 2
      %1131 = vperm.xlu0 %1130, %v1127
      %v1132 = vpop.permute.xlu0 %1131
      %1135 = vset.pattern.permute.xlu0 2
      %1136 = vperm.xlu0 %1135, %v1128
      %v1137 = vpop.permute.xlu0 %1136
      %v1139 = vmul.f32 %v1121, %v1132
      %v1140 = vmul.f32 %v1124, %v1137
      %v1141 = vadd.f32 %v859, %v1139
      %v1142 = vadd.f32 %v862, %v1140
      %vm1143 = vcmask 15360
      %1144 = vst.msk [vmem:[%s442] sm:$0xff] %vm1143, %v1141
      %1145 = vst.msk [vmem:[%s442 + $0x8] sm:$0xff] %vm1143, %v1142
      %s1146 = smul.u32 2, %s24
      %p1147 = scmp.lt.s32.totalorder %s1146, 3
      %s1148 = scalar_select %p1147, %s1146, 3
      %s1149 = smul.addr %s1148, 8
      %s1150 = scalar_lea.vmem %s13, %s1149
      // Predicated region
      $region73: #{tpu_custom_call.1} parent=71 // pred_check
        %p1151 = pneg %p320
      $region74: #{tpu_custom_call.1} parent=71 // pred_check_branch
        %1153 = sbr.rel (%p1151) target = $region76
      $region75: #{tpu_custom_call.1} parent=71 // pred_region
        %s1154 = smul.u32 2, %s24
      $region76: #{tpu_custom_call.1} parent=71 // pred_fallthru
        _
    $region72: #{tpu_custom_call.1} parent=5 // pred_fallthru
      _
    %p1155 = scmp.le.s32.totalorder 2, %s19
    // Predicated region
    $region77: #{tpu_custom_call.1} parent=5 // pred_check
      %p1156 = pneg %p1155
    $region78: #{tpu_custom_call.1} parent=5 // pred_check_branch
      %1158 = sbr.rel (%p1156) target = $region80
    $region79: #{tpu_custom_call.1} parent=5 // pred_region
      %s1159 = ssub.s32 %s19, 2
      // Predicated region
      $region81: #{tpu_custom_call.1} parent=79 // pred_check
        %p1160 = pneg %p326
      $region82: #{tpu_custom_call.1} parent=79 // pred_check_branch
        %1162 = sbr.rel (%p1160) target = $region84
      $region83: #{tpu_custom_call.1} parent=79 // pred_region
        %s1163 = smul.u32 2, %s25
        %p1164 = scmp.lt.s32.totalorder %s1163, 3
        %s1165 = scalar_select %p1164, %s1163, 3
        %s1166 = smul.addr %s1165, 8
        %s1167 = scalar_lea.vmem %s13, %s1166
      $region84: #{tpu_custom_call.1} parent=79 // pred_fallthru
        _
    $region80: #{tpu_custom_call.1} parent=5 // pred_fallthru
      _
  $region6: #{tpu_custom_call.1} parent=0 // loop_footer
    %s23 = sadd.s32 1, %s19
  $region7: #{tpu_custom_call.1} parent=0 // loop_footer_branch
    %18 = sbr.rel target = $region3
  $region8: #{tpu_custom_call.1} parent=0 // loop_exit
    _

</llo_original>
